<compile_context>
chip_gen: v6e
topology: v6e:2x2x1
jax: 0.10.0
libtpu: 0.0.40
codegen_flags: <defaults>
</compile_context>

<pallas_src>
import functools

import jax
import jax.numpy as jnp
from jax.experimental import pallas as pl
from jax.experimental.pallas import tpu as pltpu

EPS = 1e-5


def _padded_f32_bytes(shape):
  """Bytes of an f32 array once padded to the (8, 128) vreg/VMEM tiling."""
  shape = tuple(shape)
  if len(shape) == 1:
    shape = (1,) + shape
  lead = 1
  for d in shape[:-2]:
    lead *= d
  sub = -(-shape[-2] // 8) * 8
  lane = -(-shape[-1] // 128) * 128
  return 4 * lead * sub * lane


def _vmem_capacity_bytes():
  try:
    return int(pltpu.get_tpu_info().vmem_capacity_bytes)
  except Exception:
    return 64 * 1024 * 1024  # v7x per-TC figure (most restrictive generation)


def _make_kernel(Cin, Cmid, Cout, rows, change_input):
  """Fused ResNetBlock kernel operating in transposed (C, rows) layout."""
  inv_m = 1.0 / rows

  def bn(y, g, b):
    # Training-mode BatchNorm2d. Mean-shifted (centred) variance: no
    # E[y^2]-mean^2 cancellation, and the centred slab `d` is reused by the
    # final normalise FMA, so this costs the same number of passes.
    mean = jnp.sum(y, axis=-1, keepdims=True) * inv_m     # XLU lane reduce
    d = y - mean
    var = jnp.sum(d * d, axis=-1, keepdims=True) * inv_m  # XLU lane reduce
    scale = g * jax.lax.rsqrt(var + EPS)                  # EUP
    return d * scale + b                                  # VPU FMA

  if change_input:
    def kernel(xcol_ref, wcat_ref, gcat_ref, bcat_ref, w3_ref, g3_ref,
               be3_ref, out_ref):
      xcol = xcol_ref[...]                                # (9*Cin, rows)
      # conv2 + projection conv4 in ONE MXU matmul: weights stacked on the
      # output (sublane) axis, tap axis folded into K = 9*Cin.
      acc = jnp.dot(wcat_ref[...], xcol,
                    preferred_element_type=jnp.float32)   # (Cmid+Cout, rows)
      # bn2 and bn4 share a single stats + normalise pass on the stacked slab.
      bnf = bn(acc, gcat_ref[...], bcat_ref[...])
      h = jnp.maximum(bnf[:Cmid], 0.0)                    # ReLU (main path)
      shortcut = bnf[Cmid:]                               # bn4(conv4(x))
      z = jnp.dot(w3_ref[...], h,
                  preferred_element_type=jnp.float32)     # 1x1 conv3
      r = bn(z, g3_ref[...], be3_ref[...]) + shortcut
      out_ref[...] = jnp.maximum(r, 0.0).astype(out_ref.dtype)
  else:
    def kernel(xcol_ref, w2_ref, g2_ref, be2_ref, w3_ref, g3_ref, be3_ref,
               out_ref):
      xcol = xcol_ref[...]                                # (9*Cin, rows)
      acc2 = jnp.dot(w2_ref[...], xcol,
                     preferred_element_type=jnp.float32)  # (Cmid, rows)
      h = jnp.maximum(bn(acc2, g2_ref[...], be2_ref[...]), 0.0)
      z = jnp.dot(w3_ref[...], h,
                  preferred_element_type=jnp.float32)     # 1x1 conv3
      # Identity residual: the centre tap block (dy=dx=1) of the tap-major
      # im2col slab IS the original activation (stride 1); the slice start
      # 4*Cin is sublane-aligned, so this is a free view.
      center = xcol[4 * Cin:5 * Cin, :]
      r = bn(z, g3_ref[...], be3_ref[...]) + center
      out_ref[...] = jnp.maximum(r, 0.0).astype(out_ref.dtype)

  return kernel


@functools.partial(jax.jit, static_argnames=("stride", "change_input"))
def resnet_block_forward(x_nchw, params, *, stride, change_input):
  """Forward pass of ResNetBlock.  x_nchw: (N, C, H, W) float32."""
  x = x_nchw.astype(jnp.float32)
  N, Cin, H, W = x.shape
  Ho = (H + 2 - 3) // stride + 1
  Wo = (W + 2 - 3) // stride + 1
  rows = N * Ho * Wo

  # --- im2col in the wrapper (K-fold): (9*Cin, rows), tap-major then channel.
  # XLA fuses the pad + 9 strided slices + transpose into the single relayout
  # the activation needs anyway; the kernel then sees one lane-dense slab.
  xpad = jnp.pad(x, ((0, 0), (0, 0), (1, 1), (1, 1)))
  slabs = [xpad[:, :, dy:dy + (Ho - 1) * stride + 1:stride,
                dx:dx + (Wo - 1) * stride + 1:stride]
           for dy in range(3) for dx in range(3)]
  xcol = jnp.stack(slabs, axis=0)                          # (9, N, Cin, Ho, Wo)
  xcol = jnp.transpose(xcol, (0, 2, 1, 3, 4)).reshape(9 * Cin, rows)

  # PyTorch conv weights (Cout, Cin, kh, kw) -> (Cout, 9*Cin), tap-major K.
  w2 = jnp.transpose(params["w2"], (0, 2, 3, 1)).reshape(-1, 9 * Cin)
  Cmid = w2.shape[0]
  w3 = params["w3"][:, :, 0, 0].astype(jnp.float32)        # (Cout, Cmid)
  Cout = w3.shape[0]

  def col(p):  # per-channel BN param as a (C, 1) lane-broadcast column
    return p.reshape(-1, 1).astype(jnp.float32)

  # NOTE: conv biases b2/b3/b4 are intentionally NOT passed: a per-channel
  # constant bias is cancelled exactly by the following training-mode BN.
  if change_input:
    w4 = jnp.transpose(params["w4"], (0, 2, 3, 1)).reshape(Cout, 9 * Cin)
    wcat = jnp.concatenate([w2, w4], axis=0)               # (Cmid+Cout, 9*Cin)
    gcat = jnp.concatenate([col(params["g2"]), col(params["g4"])], axis=0)
    bcat = jnp.concatenate([col(params["be2"]), col(params["be4"])], axis=0)
    args = [xcol, wcat, gcat, bcat, w3, col(params["g3"]), col(params["be3"])]
  else:
    if Cout != Cin:
      raise ValueError("identity shortcut requires channels_out == channels_in")
    if stride != 1:
      raise ValueError("identity shortcut requires stride == 1 (as in PyTorch)")
    args = [xcol, w2, col(params["g2"]), col(params["be2"]),
            w3, col(params["g3"]), col(params["be3"])]

  kernel = _make_kernel(Cin, Cmid, Cout, rows, change_input)

  # ---- VMEM budget: (8,128)-padded resident footprint vs. real capacity. ----
  c_main = Cmid + Cout if change_input else Cmid
  resident = (2 * _padded_f32_bytes((9 * Cin, rows))       # xcol ref + value
              + _padded_f32_bytes((c_main, 9 * Cin))       # stacked 3x3 weights
              + _padded_f32_bytes((Cout, Cmid))            # w3
              + 4 * _padded_f32_bytes((c_main, rows))      # acc / d / bnf / h
              + 3 * _padded_f32_bytes((Cout, rows))        # z / r / out
              + 6 * _padded_f32_bytes((c_main, 1)))        # BN columns
  cap = _vmem_capacity_bytes()
  if resident > (cap * 7) // 10:
    # TODO(synk): grid over row tiles with two-pass cross-tile BN statistics
    #             for shapes exceeding a single VMEM-resident block.
    raise NotImplementedError(
        "ResNetBlock Pallas kernel: shapes too large for the single-block "
        "VMEM design; row-tiled grid not implemented.")
  vmem_limit = int(min((cap * 3) // 4, max(16 * 1024 * 1024, 2 * resident)))

  flops = 2 * rows * 9 * Cin * c_main + 2 * rows * Cmid * Cout
  n_bn_ch = c_main + Cout
  flops += 8 * rows * n_bn_ch                               # BN stats+normalise
  bytes_accessed = (_padded_f32_bytes((9 * Cin, rows))
                    + _padded_f32_bytes((c_main, 9 * Cin))
                    + _padded_f32_bytes((Cout, Cmid))
                    + _padded_f32_bytes((Cout, rows))
                    + 6 * _padded_f32_bytes((c_main, 1)))

  out2d = pl.pallas_call(
      kernel,
      out_shape=jax.ShapeDtypeStruct((Cout, rows), jnp.float32),
      in_specs=[pl.BlockSpec(memory_space=pltpu.MemorySpace.VMEM)] * len(args),
      out_specs=pl.BlockSpec(memory_space=pltpu.MemorySpace.VMEM),
      compiler_params=pltpu.CompilerParams(vmem_limit_bytes=vmem_limit),
      cost_estimate=pl.CostEstimate(
          flops=int(flops),
          transcendentals=int(n_bn_ch),                     # rsqrt per channel
          bytes_accessed=int(bytes_accessed)),
  )(*args)

  # (Cout, N*Ho*Wo) -> NCHW.  This is the only relayout on the way out.
  out = out2d.reshape(Cout, N, Ho, Wo)
  return jnp.transpose(out, (1, 0, 2, 3))


# ---------------------------------------------------------------------------
# Pure-JAX reference (NCHW, matches torch ops) for correctness checking.
# ---------------------------------------------------------------------------
def ref_forward(x, params, *, stride, change_input):
  def conv(x, w, b, s, pad):
    y = jax.lax.conv_general_dilated(
        x, w, (s, s), [(pad, pad), (pad, pad)],
        dimension_numbers=("NCHW", "OIHW", "NCHW"))
    return y + b.reshape(1, -1, 1, 1)

  def bn(y, g, b):
    mean = y.mean(axis=(0, 2, 3), keepdims=True)
    var = ((y - mean) ** 2).mean(axis=(0, 2, 3), keepdims=True)
    return (y - mean) / jnp.sqrt(var + EPS) * g.reshape(1, -1, 1, 1) \
        + b.reshape(1, -1, 1, 1)

  r = jax.nn.relu(bn(conv(x, params["w2"], params["b2"], stride, 1),
                     params["g2"], params["be2"]))
  r = bn(conv(r, params["w3"], params["b3"], 1, 0), params["g3"], params["be3"])
  if change_input:
    r = r + bn(conv(x, params["w4"], params["b4"], stride, 1),
               params["g4"], params["be4"])
  else:
    r = r + x
  return jax.nn.relu(r)


def make_params(key, cin, cmid, cout, change_input):
  ks = jax.random.split(key, 8)
  p = {
      "w2": 0.1 * jax.random.normal(ks[0], (cmid, cin, 3, 3), jnp.float32),
      "b2": 0.1 * jax.random.normal(ks[1], (cmid,), jnp.float32),
      "g2": jnp.ones((cmid,), jnp.float32),
      "be2": jnp.zeros((cmid,), jnp.float32),
      "w3": 0.1 * jax.random.normal(ks[2], (cout, cmid, 1, 1), jnp.float32),
      "b3": 0.1 * jax.random.normal(ks[3], (cout,), jnp.float32),
      "g3": jnp.ones((cout,), jnp.float32),
      "be3": jnp.zeros((cout,), jnp.float32),
  }
  if change_input:
    p.update({
        "w4": 0.1 * jax.random.normal(ks[4], (cout, cin, 3, 3), jnp.float32),
        "b4": 0.1 * jax.random.normal(ks[5], (cout,), jnp.float32),
        "g4": jnp.ones((cout,), jnp.float32),
        "be4": jnp.zeros((cout,), jnp.float32),
    })
  return p


if __name__ == "__main__":
  key = jax.random.PRNGKey(0)
  kx, kp1, kp2 = jax.random.split(key, 3)

  # Case 1: identity shortcut (change_input=False, stride=1).
  N, C, H, W = 2, 8, 16, 16
  x = jax.random.normal(kx, (N, C, H, W), jnp.float32)
  params1 = make_params(kp1, C, C, C, change_input=False)
  out1 = resnet_block_forward(x, params1, stride=1, change_input=False)
  out1 = jax.block_until_ready(out1)
  ref1 = ref_forward(x, params1, stride=1, change_input=False)
  assert out1.shape == (N, C, H, W)
  assert jnp.allclose(out1, ref1, rtol=1e-3, atol=1e-3), "case1 mismatch"

  # Case 2: projection shortcut (change_input=True), channel expansion 8 -> 16.
  Cout = 16
  params2 = make_params(kp2, C, C, Cout, change_input=True)
  out2 = resnet_block_forward(x, params2, stride=1, change_input=True)
  out2 = jax.block_until_ready(out2)
  ref2 = ref_forward(x, params2, stride=1, change_input=True)
  assert out2.shape == (N, Cout, H, W)
  assert jnp.allclose(out2, ref2, rtol=1e-3, atol=1e-3), "case2 mismatch"

  print("KERNEL_OK")
</pallas_src>

<mosaic_0001>
module attributes {stable_mosaic.version = 11 : i64} {
  func.func @kernel(%arg0: memref<72x512xf32, #tpu.memory_space<vmem>>, %arg1: memref<8x72xf32, #tpu.memory_space<vmem>>, %arg2: memref<8x1xf32, #tpu.memory_space<vmem>>, %arg3: memref<8x1xf32, #tpu.memory_space<vmem>>, %arg4: memref<8x8xf32, #tpu.memory_space<vmem>>, %arg5: memref<8x1xf32, #tpu.memory_space<vmem>>, %arg6: memref<8x1xf32, #tpu.memory_space<vmem>>, %arg7: memref<8x512xf32, #tpu.memory_space<vmem>>) attributes {dimension_semantics = [], scalar_prefetch = 0 : i64, scratch_operands = 0 : i64, tpu.core_type = #tpu.core_type<tc>} {
    %c0 = arith.constant 0 : index
    %c0_0 = arith.constant 0 : index
    %0 = vector.load %arg0[%c0, %c0_0] : memref<72x512xf32, #tpu.memory_space<vmem>>, vector<72x512xf32>
    %c0_1 = arith.constant 0 : index
    %c0_2 = arith.constant 0 : index
    %1 = vector.load %arg1[%c0_1, %c0_2] : memref<8x72xf32, #tpu.memory_space<vmem>>, vector<8x72xf32>
    %cst = arith.constant dense<0.000000e+00> : vector<8x512xf32>
    %2 = tpu.matmul %1, %0, %cst {dimension_numbers = #tpu.dot_dimension_numbers<[1], [0], [0], [1], [0, 0, 1, 1], [], []>} : vector<8x72xf32>, vector<72x512xf32>, vector<8x512xf32> -> vector<8x512xf32>
    %c0_3 = arith.constant 0 : index
    %c0_4 = arith.constant 0 : index
    %3 = vector.load %arg2[%c0_3, %c0_4] : memref<8x1xf32, #tpu.memory_space<vmem>>, vector<8x1xf32>
    %c0_5 = arith.constant 0 : index
    %c0_6 = arith.constant 0 : index
    %4 = vector.load %arg3[%c0_5, %c0_6] : memref<8x1xf32, #tpu.memory_space<vmem>>, vector<8x1xf32>
    %cst_7 = arith.constant dense<0.000000e+00> : vector<8xf32>
    %5 = vector.multi_reduction <add>, %2, %cst_7 [1] : vector<8x512xf32> to vector<8xf32>
    %6 = vector.shape_cast %5 : vector<8xf32> to vector<8x1xf32>
    %cst_8 = arith.constant 0.001953125 : f32
    %7 = vector.broadcast %cst_8 : f32 to vector<8x1xf32>
    %8 = arith.mulf %6, %7 : vector<8x1xf32>
    %9 = vector.broadcast %8 : vector<8x1xf32> to vector<8x512xf32>
    %10 = arith.subf %2, %9 : vector<8x512xf32>
    %11 = arith.mulf %10, %10 : vector<8x512xf32>
    %cst_9 = arith.constant dense<0.000000e+00> : vector<8xf32>
    %12 = vector.multi_reduction <add>, %11, %cst_9 [1] : vector<8x512xf32> to vector<8xf32>
    %13 = vector.shape_cast %12 : vector<8xf32> to vector<8x1xf32>
    %cst_10 = arith.constant 0.001953125 : f32
    %14 = vector.broadcast %cst_10 : f32 to vector<8x1xf32>
    %15 = arith.mulf %13, %14 : vector<8x1xf32>
    %cst_11 = arith.constant 9.99999974E-6 : f32
    %16 = vector.broadcast %cst_11 : f32 to vector<8x1xf32>
    %17 = arith.addf %15, %16 : vector<8x1xf32>
    %18 = math.rsqrt %17 : vector<8x1xf32>
    %19 = arith.mulf %3, %18 : vector<8x1xf32>
    %20 = vector.broadcast %19 : vector<8x1xf32> to vector<8x512xf32>
    %21 = arith.mulf %10, %20 : vector<8x512xf32>
    %22 = vector.broadcast %4 : vector<8x1xf32> to vector<8x512xf32>
    %23 = arith.addf %21, %22 : vector<8x512xf32>
    %cst_12 = arith.constant 0.000000e+00 : f32
    %24 = vector.broadcast %cst_12 : f32 to vector<8x512xf32>
    %25 = arith.maximumf %23, %24 : vector<8x512xf32>
    %c0_13 = arith.constant 0 : index
    %c0_14 = arith.constant 0 : index
    %26 = vector.load %arg4[%c0_13, %c0_14] : memref<8x8xf32, #tpu.memory_space<vmem>>, vector<8x8xf32>
    %cst_15 = arith.constant dense<0.000000e+00> : vector<8x512xf32>
    %27 = tpu.matmul %26, %25, %cst_15 {dimension_numbers = #tpu.dot_dimension_numbers<[1], [0], [0], [1], [0, 0, 1, 1], [], []>} : vector<8x8xf32>, vector<8x512xf32>, vector<8x512xf32> -> vector<8x512xf32>
    %28 = vector.extract_strided_slice %0 {offsets = [32, 0], sizes = [8, 512], strides = [1, 1]} : vector<72x512xf32> to vector<8x512xf32>
    %c0_16 = arith.constant 0 : index
    %c0_17 = arith.constant 0 : index
    %29 = vector.load %arg5[%c0_16, %c0_17] : memref<8x1xf32, #tpu.memory_space<vmem>>, vector<8x1xf32>
    %c0_18 = arith.constant 0 : index
    %c0_19 = arith.constant 0 : index
    %30 = vector.load %arg6[%c0_18, %c0_19] : memref<8x1xf32, #tpu.memory_space<vmem>>, vector<8x1xf32>
    %cst_20 = arith.constant dense<0.000000e+00> : vector<8xf32>
    %31 = vector.multi_reduction <add>, %27, %cst_20 [1] : vector<8x512xf32> to vector<8xf32>
    %32 = vector.shape_cast %31 : vector<8xf32> to vector<8x1xf32>
    %cst_21 = arith.constant 0.001953125 : f32
    %33 = vector.broadcast %cst_21 : f32 to vector<8x1xf32>
    %34 = arith.mulf %32, %33 : vector<8x1xf32>
    %35 = vector.broadcast %34 : vector<8x1xf32> to vector<8x512xf32>
    %36 = arith.subf %27, %35 : vector<8x512xf32>
    %37 = arith.mulf %36, %36 : vector<8x512xf32>
    %cst_22 = arith.constant dense<0.000000e+00> : vector<8xf32>
    %38 = vector.multi_reduction <add>, %37, %cst_22 [1] : vector<8x512xf32> to vector<8xf32>
    %39 = vector.shape_cast %38 : vector<8xf32> to vector<8x1xf32>
    %cst_23 = arith.constant 0.001953125 : f32
    %40 = vector.broadcast %cst_23 : f32 to vector<8x1xf32>
    %41 = arith.mulf %39, %40 : vector<8x1xf32>
    %cst_24 = arith.constant 9.99999974E-6 : f32
    %42 = vector.broadcast %cst_24 : f32 to vector<8x1xf32>
    %43 = arith.addf %41, %42 : vector<8x1xf32>
    %44 = math.rsqrt %43 : vector<8x1xf32>
    %45 = arith.mulf %29, %44 : vector<8x1xf32>
    %46 = vector.broadcast %45 : vector<8x1xf32> to vector<8x512xf32>
    %47 = arith.mulf %36, %46 : vector<8x512xf32>
    %48 = vector.broadcast %30 : vector<8x1xf32> to vector<8x512xf32>
    %49 = arith.addf %47, %48 : vector<8x512xf32>
    %50 = arith.addf %49, %28 : vector<8x512xf32>
    %cst_25 = arith.constant 0.000000e+00 : f32
    %51 = vector.broadcast %cst_25 : f32 to vector<8x512xf32>
    %52 = arith.maximumf %50, %51 : vector<8x512xf32>
    %c0_26 = arith.constant 0 : index
    %c0_27 = arith.constant 0 : index
    %53 = vector.load %arg7[%c0_26, %c0_27] : memref<8x512xf32, #tpu.memory_space<vmem>>, vector<8x512xf32>
    tpu.vector_store %arg7[%c0_26, %c0_27], %52 {strides = array<i32>} : memref<8x512xf32, #tpu.memory_space<vmem>>, vector<8x512xf32>,
    return
  }
}

</mosaic_0001>

<llo_original>
// kernel: resnet_block_forward.1
$region0: #{resnet_block_forward.1}
  #allocation0 [shape = 'u32[]', space=smem, size = 0x4, offset = 0x4, fixed_abs, tag = 'smem constant byte address 0x4 - core index']
  #allocation1 [shape = 'u32[144,128]{1,0:T(1,128)}', space=vmem, size = 0x12000, scoped, tag = 'internal scratch']
  %s0 = inlined_call_operand.vmem [shape: f32[72,512], index: 0, kind: input, shape index: {}]
  %s1 = inlined_call_operand.vmem [shape: f32[8,72], index: 1, kind: input, shape index: {}]
  %s2 = inlined_call_operand.vmem [shape: f32[8,1], index: 2, kind: input, shape index: {}]
  %s3 = inlined_call_operand.vmem [shape: f32[8,1], index: 3, kind: input, shape index: {}]
  %s4 = inlined_call_operand.vmem [shape: f32[8,8], index: 4, kind: input, shape index: {}]
  %s5 = inlined_call_operand.vmem [shape: f32[8,1], index: 5, kind: input, shape index: {}]
  %s6 = inlined_call_operand.vmem [shape: f32[8,1], index: 6, kind: input, shape index: {}]
  %s7 = inlined_call_operand.vmem [shape: f32[8,512], index: 7, kind: output, shape index: {}]
  %s8 = sld [smem:[#allocation0]]
  $region38: #{resnet_block_forward.1} parent=0
    _
  %s10 = ssub.s32 1, %s8
  %s11 = scalar_select 0, %s10, %s8
  // Predicated region
  $region2: #{resnet_block_forward.1} parent=0 // pred_check
    _
  $region3: #{resnet_block_forward.1} parent=0 // pred_check_branch
    %13 = sbr.rel (0) target = $region5
  $region4: #{resnet_block_forward.1} parent=0 // pred_region
    _
  $region5: #{resnet_block_forward.1} parent=0 // pred_fallthru
    _
  // Predicated region
  $region6: #{resnet_block_forward.1} parent=0 // pred_check
    _
  $region7: #{resnet_block_forward.1} parent=0 // pred_check_branch
    %15 = sbr.rel (0) target = $region9
  $region8: #{resnet_block_forward.1} parent=0 // pred_region
    _
  $region9: #{resnet_block_forward.1} parent=0 // pred_fallthru
    _
  // Predicated region
  $region10: #{resnet_block_forward.1} parent=0 // pred_check
    _
  $region11: #{resnet_block_forward.1} parent=0 // pred_check_branch
    %17 = sbr.rel (0) target = $region13
  $region12: #{resnet_block_forward.1} parent=0 // pred_region
    _
  $region13: #{resnet_block_forward.1} parent=0 // pred_fallthru
    _
  // Predicated region
  $region14: #{resnet_block_forward.1} parent=0 // pred_check
    _
  $region15: #{resnet_block_forward.1} parent=0 // pred_check_branch
    %19 = sbr.rel (0) target = $region17
  $region16: #{resnet_block_forward.1} parent=0 // pred_region
    _
  $region17: #{resnet_block_forward.1} parent=0 // pred_fallthru
    _
  // Predicated region
  $region18: #{resnet_block_forward.1} parent=0 // pred_check
    _
  $region19: #{resnet_block_forward.1} parent=0 // pred_check_branch
    %21 = sbr.rel (0) target = $region21
  $region20: #{resnet_block_forward.1} parent=0 // pred_region
    _
  $region21: #{resnet_block_forward.1} parent=0 // pred_fallthru
    _
  // Predicated region
  $region22: #{resnet_block_forward.1} parent=0 // pred_check
    _
  $region23: #{resnet_block_forward.1} parent=0 // pred_check_branch
    %23 = sbr.rel (0) target = $region25
  $region24: #{resnet_block_forward.1} parent=0 // pred_region
    _
  $region25: #{resnet_block_forward.1} parent=0 // pred_fallthru
    _
  // Predicated region
  $region26: #{resnet_block_forward.1} parent=0 // pred_check
    _
  $region27: #{resnet_block_forward.1} parent=0 // pred_check_branch
    %25 = sbr.rel (0) target = $region29
  $region28: #{resnet_block_forward.1} parent=0 // pred_region
    _
  $region29: #{resnet_block_forward.1} parent=0 // pred_fallthru
    _
  %v26 = vld [vmem:[%s0] sm:$0xff]
  %v27 = vld [vmem:[%s0 + $0x8] sm:$0xff]
  %v28 = vld [vmem:[%s0 + $0x10] sm:$0xff]
  %v29 = vld [vmem:[%s0 + $0x18] sm:$0xff]
  %v30 = vld [vmem:[%s0 + $0x20] sm:$0xff]
  %v31 = vld [vmem:[%s0 + $0x28] sm:$0xff]
  %v32 = vld [vmem:[%s0 + $0x30] sm:$0xff]
  %v33 = vld [vmem:[%s0 + $0x38] sm:$0xff]
  %v34 = vld [vmem:[%s0 + $0x40] sm:$0xff]
  %v35 = vld [vmem:[%s0 + $0x48] sm:$0xff]
  %v36 = vld [vmem:[%s0 + $0x50] sm:$0xff]
  %v37 = vld [vmem:[%s0 + $0x58] sm:$0xff]
  %v38 = vld [vmem:[%s0 + $0x60] sm:$0xff]
  %v39 = vld [vmem:[%s0 + $0x68] sm:$0xff]
  %v40 = vld [vmem:[%s0 + $0x70] sm:$0xff]
  %v41 = vld [vmem:[%s0 + $0x78] sm:$0xff]
  %v42 = vld [vmem:[%s0 + $0x80] sm:$0xff]
  %v43 = vld [vmem:[%s0 + $0x88] sm:$0xff]
  %v44 = vld [vmem:[%s0 + $0x90] sm:$0xff]
  %v45 = vld [vmem:[%s0 + $0x98] sm:$0xff]
  %v46 = vld [vmem:[%s0 + $0xa0] sm:$0xff]
  %v47 = vld [vmem:[%s0 + $0xa8] sm:$0xff]
  %v48 = vld [vmem:[%s0 + $0xb0] sm:$0xff]
  %v49 = vld [vmem:[%s0 + $0xb8] sm:$0xff]
  %v50 = vld [vmem:[%s0 + $0xc0] sm:$0xff]
  %v51 = vld [vmem:[%s0 + $0xc8] sm:$0xff]
  %v52 = vld [vmem:[%s0 + $0xd0] sm:$0xff]
  %v53 = vld [vmem:[%s0 + $0xd8] sm:$0xff]
  %v54 = vld [vmem:[%s0 + $0xe0] sm:$0xff]
  %v55 = vld [vmem:[%s0 + $0xe8] sm:$0xff]
  %v56 = vld [vmem:[%s0 + $0xf0] sm:$0xff]
  %v57 = vld [vmem:[%s0 + $0xf8] sm:$0xff]
  %v58 = vld [vmem:[%s0 + $0x100] sm:$0xff]
  %v59 = vld [vmem:[%s0 + $0x108] sm:$0xff]
  %v60 = vld [vmem:[%s0 + $0x110] sm:$0xff]
  %v61 = vld [vmem:[%s0 + $0x118] sm:$0xff]
  %v62 = vld [vmem:[%s1] sm:$0xff]
  %vm63 = vcmask 588800
  %v65 = vsel %vm63, %v62, 0
  %67 = vmatprep.subr.mxu0 0.0
  %68 = vmatpush1.msra.mxu0 0.0
  %69 = vmatprep.subr.mxu0 0.0
  %70 = vmatpush1.msra.mxu0 0.0
  %71 = vmatprep.subr.mxu0 0.0
  %72 = vmatpush1.msra.mxu0 0.0
  %73 = vmatprep.subr.mxu0 0.0
  %74 = vmatpush1.msra.mxu0 0.0
  %75 = vmatprep.subr.mxu0 0.0
  %76 = vmatpush1.msra.mxu0 0.0
  %77 = vmatprep.subr.mxu0 0.0
  %78 = vmatpush1.msra.mxu0 0.0
  %79 = vmatprep.subr.mxu0 0.0
  %80 = vmatpush1.msra.mxu0 0.0
  %81 = vmatprep.subr.mxu0 %v59
  %82 = vmatpush1.msra.mxu0 %v58
  %83 = vmatprep.subr.mxu0 %v55
  %84 = vmatpush1.msra.mxu0 %v54
  %85 = vmatprep.subr.mxu0 %v51
  %86 = vmatpush1.msra.mxu0 %v50
  %87 = vmatprep.subr.mxu0 %v47
  %88 = vmatpush1.msra.mxu0 %v46
  %89 = vmatprep.subr.mxu0 %v43
  %90 = vmatpush1.msra.mxu0 %v42
  %91 = vmatprep.subr.mxu0 %v39
  %92 = vmatpush1.msra.mxu0 %v38
  %93 = vmatprep.subr.mxu0 %v35
  %94 = vmatpush1.msra.mxu0 %v34
  %95 = vmatprep.subr.mxu0 %v31
  %96 = vmatpush1.msra.mxu0 %v30
  %97 = vmatprep.subr.mxu0 %v27
  %98 = vmatpush1.msra.mxu0 %v26
  %99 = vmatprep.subr.mxu0 0.0
  %100 = vmatpush2.msra.mxu0 0.0
  %101 = vmatprep.subr.mxu0 0.0
  %102 = vmatpush2.msra.mxu0 0.0
  %103 = vmatprep.subr.mxu0 0.0
  %104 = vmatpush2.msra.mxu0 0.0
  %105 = vmatprep.subr.mxu0 0.0
  %106 = vmatpush2.msra.mxu0 0.0
  %107 = vmatprep.subr.mxu0 0.0
  %108 = vmatpush2.msra.mxu0 0.0
  %109 = vmatprep.subr.mxu0 0.0
  %110 = vmatpush2.msra.mxu0 0.0
  %111 = vmatprep.subr.mxu0 0.0
  %112 = vmatpush2.msra.mxu0 0.0
  %113 = vmatprep.subr.mxu0 0.0
  %114 = vmatpush2.msra.mxu0 0.0
  %115 = vmatprep.subr.mxu0 0.0
  %116 = vmatpush2.msra.mxu0 0.0
  %117 = vmatprep.subr.mxu0 0.0
  %118 = vmatpush2.msra.mxu0 0.0
  %119 = vmatprep.subr.mxu0 0.0
  %120 = vmatpush2.msra.mxu0 0.0
  %121 = vmatprep.subr.mxu0 0.0
  %122 = vmatpush2.msra.mxu0 0.0
  %123 = vmatprep.subr.mxu0 0.0
  %124 = vmatpush2.msra.mxu0 0.0
  %125 = vmatprep.subr.mxu0 0.0
  %126 = vmatpush2.msra.mxu0 0.0
  %127 = vmatprep.subr.mxu0 0.0
  %128 = vmatpush2.msra.mxu0 0.0
  %129 = vmatprep.subr.mxu0 0.0
  %130 = vmatpush2.msra.mxu0 0.0
  %131 = vmatprep.mubr.f32.mxu0 0.0
  %132 = vmatmul.mubr.f32.gmra.mxu0 %v65
  %v133 = vpop.f32.mrf.mxu0
  %v134 = vadd.f32 0.0, %v133
  %v135 = vpop.f32.mrf.mxu0
  %v136 = vadd.f32 0.0, %v135
  %137 = vdwg.mxu0
  %138 = vmatprep.subr.mxu0 0.0
  %139 = vmatpush1.msra.mxu0 0.0
  %140 = vmatprep.subr.mxu0 0.0
  %141 = vmatpush1.msra.mxu0 0.0
  %142 = vmatprep.subr.mxu0 0.0
  %143 = vmatpush1.msra.mxu0 0.0
  %144 = vmatprep.subr.mxu0 0.0
  %145 = vmatpush1.msra.mxu0 0.0
  %146 = vmatprep.subr.mxu0 0.0
  %147 = vmatpush1.msra.mxu0 0.0
  %148 = vmatprep.subr.mxu0 0.0
  %149 = vmatpush1.msra.mxu0 0.0
  %150 = vmatprep.subr.mxu0 0.0
  %151 = vmatpush1.msra.mxu0 0.0
  %152 = vmatprep.subr.mxu0 %v61
  %153 = vmatpush1.msra.mxu0 %v60
  %154 = vmatprep.subr.mxu0 %v57
  %155 = vmatpush1.msra.mxu0 %v56
  %156 = vmatprep.subr.mxu0 %v53
  %157 = vmatpush1.msra.mxu0 %v52
  %158 = vmatprep.subr.mxu0 %v49
  %159 = vmatpush1.msra.mxu0 %v48
  %160 = vmatprep.subr.mxu0 %v45
  %161 = vmatpush1.msra.mxu0 %v44
  %162 = vmatprep.subr.mxu0 %v41
  %163 = vmatpush1.msra.mxu0 %v40
  %164 = vmatprep.subr.mxu0 %v37
  %165 = vmatpush1.msra.mxu0 %v36
  %166 = vmatprep.subr.mxu0 %v33
  %167 = vmatpush1.msra.mxu0 %v32
  %168 = vmatprep.subr.mxu0 %v29
  %169 = vmatpush1.msra.mxu0 %v28
  %170 = vmatprep.subr.mxu0 0.0
  %171 = vmatpush2.msra.mxu0 0.0
  %172 = vmatprep.subr.mxu0 0.0
  %173 = vmatpush2.msra.mxu0 0.0
  %174 = vmatprep.subr.mxu0 0.0
  %175 = vmatpush2.msra.mxu0 0.0
  %176 = vmatprep.subr.mxu0 0.0
  %177 = vmatpush2.msra.mxu0 0.0
  %178 = vmatprep.subr.mxu0 0.0
  %179 = vmatpush2.msra.mxu0 0.0
  %180 = vmatprep.subr.mxu0 0.0
  %181 = vmatpush2.msra.mxu0 0.0
  %182 = vmatprep.subr.mxu0 0.0
  %183 = vmatpush2.msra.mxu0 0.0
  %184 = vmatprep.subr.mxu0 0.0
  %185 = vmatpush2.msra.mxu0 0.0
  %186 = vmatprep.subr.mxu0 0.0
  %187 = vmatpush2.msra.mxu0 0.0
  %188 = vmatprep.subr.mxu0 0.0
  %189 = vmatpush2.msra.mxu0 0.0
  %190 = vmatprep.subr.mxu0 0.0
  %191 = vmatpush2.msra.mxu0 0.0
  %192 = vmatprep.subr.mxu0 0.0
  %193 = vmatpush2.msra.mxu0 0.0
  %194 = vmatprep.subr.mxu0 0.0
  %195 = vmatpush2.msra.mxu0 0.0
  %196 = vmatprep.subr.mxu0 0.0
  %197 = vmatpush2.msra.mxu0 0.0
  %198 = vmatprep.subr.mxu0 0.0
  %199 = vmatpush2.msra.mxu0 0.0
  %200 = vmatprep.subr.mxu0 0.0
  %201 = vmatpush2.msra.mxu0 0.0
  %202 = vmatprep.mubr.f32.mxu0 0.0
  %203 = vmatmul.mubr.f32.gmra.mxu0 %v65
  %v204 = vpop.f32.mrf.mxu0
  %v205 = vadd.f32 0.0, %v204
  %v206 = vpop.f32.mrf.mxu0
  %v207 = vadd.f32 0.0, %v206
  %208 = vdwg.mxu0
  %v209 = vld [vmem:[%s2] sm:$0xff]
  %v210 = vld [vmem:[%s3] sm:$0xff]
  %v211 = vadd.f32 %v134, %v136
  %v212 = vadd.f32 %v211, %v205
  %v213 = vadd.f32 %v212, %v207
  %214 = vadd.xlane.f32.xlu0 %v213
  %v215 = vpop.xlane.xlu0 %214
  %v216 = vmul.f32 %v215, 0.001953125
  %v217 = vsub.f32 %v134, %v216
  %v218 = vsub.f32 %v136, %v216
  %v219 = vsub.f32 %v205, %v216
  %v220 = vsub.f32 %v207, %v216
  %v221 = vmul.f32 %v217, %v217
  %v222 = vmul.f32 %v218, %v218
  %v223 = vmul.f32 %v219, %v219
  %v224 = vmul.f32 %v220, %v220
  %v225 = vadd.f32 %v221, %v222
  %v226 = vadd.f32 %v225, %v223
  %v227 = vadd.f32 %v226, %v224
  %228 = vadd.xlane.f32.xlu0 %v227
  %v229 = vpop.xlane.xlu0 %228
  %v230 = vmul.f32 %v229, 0.001953125
  %v231 = vadd.f32 %v230, 1e-05
  %v232 = vrsqrt.pop %v231
  %v233 = vmul.f32 %v209, %v232
  %235 = vset.pattern.permute.xlu0 0
  %236 = vperm.xlu0 %235, %v233
  %v237 = vpop.permute.xlu0 %236
  %v239 = vmul.f32 %v217, %v237
  %v240 = vmul.f32 %v218, %v237
  %v241 = vmul.f32 %v219, %v237
  %v242 = vmul.f32 %v220, %v237
  %244 = vset.pattern.permute.xlu0 0
  %245 = vperm.xlu0 %244, %v210
  %v246 = vpop.permute.xlu0 %245
  %v248 = vadd.f32 %v239, %v246
  %v249 = vadd.f32 %v240, %v246
  %v250 = vadd.f32 %v241, %v246
  %v251 = vadd.f32 %v242, %v246
  %v252 = vmax.f32 %v248, 0.0
  %v253 = vmax.f32 %v249, 0.0
  %v254 = vmax.f32 %v250, 0.0
  %v255 = vmax.f32 %v251, 0.0
  %v256 = vld [vmem:[%s4] sm:$0xff]
  %vm257 = vcmask 64512
  %v259 = vsel %vm257, %v256, 0
  %261 = vmatprep.subr.mxu0 0.0
  %262 = vmatpush1.msra.mxu0 0.0
  %263 = vmatprep.subr.mxu0 0.0
  %264 = vmatpush1.msra.mxu0 0.0
  %265 = vmatprep.subr.mxu0 0.0
  %266 = vmatpush1.msra.mxu0 0.0
  %267 = vmatprep.subr.mxu0 0.0
  %268 = vmatpush1.msra.mxu0 0.0
  %269 = vmatprep.subr.mxu0 0.0
  %270 = vmatpush1.msra.mxu0 0.0
  %271 = vmatprep.subr.mxu0 0.0
  %272 = vmatpush1.msra.mxu0 0.0
  %273 = vmatprep.subr.mxu0 0.0
  %274 = vmatpush1.msra.mxu0 0.0
  %275 = vmatprep.subr.mxu0 0.0
  %276 = vmatpush1.msra.mxu0 0.0
  %277 = vmatprep.subr.mxu0 0.0
  %278 = vmatpush1.msra.mxu0 0.0
  %279 = vmatprep.subr.mxu0 0.0
  %280 = vmatpush1.msra.mxu0 0.0
  %281 = vmatprep.subr.mxu0 0.0
  %282 = vmatpush1.msra.mxu0 0.0
  %283 = vmatprep.subr.mxu0 0.0
  %284 = vmatpush1.msra.mxu0 0.0
  %285 = vmatprep.subr.mxu0 0.0
  %286 = vmatpush1.msra.mxu0 0.0
  %287 = vmatprep.subr.mxu0 0.0
  %288 = vmatpush1.msra.mxu0 0.0
  %289 = vmatprep.subr.mxu0 0.0
  %290 = vmatpush1.msra.mxu0 0.0
  %291 = vmatprep.subr.mxu0 %v253
  %292 = vmatpush1.msra.mxu0 %v252
  %293 = vmatprep.subr.mxu0 0.0
  %294 = vmatpush2.msra.mxu0 0.0
  %295 = vmatprep.subr.mxu0 0.0
  %296 = vmatpush2.msra.mxu0 0.0
  %297 = vmatprep.subr.mxu0 0.0
  %298 = vmatpush2.msra.mxu0 0.0
  %299 = vmatprep.subr.mxu0 0.0
  %300 = vmatpush2.msra.mxu0 0.0
  %301 = vmatprep.subr.mxu0 0.0
  %302 = vmatpush2.msra.mxu0 0.0
  %303 = vmatprep.subr.mxu0 0.0
  %304 = vmatpush2.msra.mxu0 0.0
  %305 = vmatprep.subr.mxu0 0.0
  %306 = vmatpush2.msra.mxu0 0.0
  %307 = vmatprep.subr.mxu0 0.0
  %308 = vmatpush2.msra.mxu0 0.0
  %309 = vmatprep.subr.mxu0 0.0
  %310 = vmatpush2.msra.mxu0 0.0
  %311 = vmatprep.subr.mxu0 0.0
  %312 = vmatpush2.msra.mxu0 0.0
  %313 = vmatprep.subr.mxu0 0.0
  %314 = vmatpush2.msra.mxu0 0.0
  %315 = vmatprep.subr.mxu0 0.0
  %316 = vmatpush2.msra.mxu0 0.0
  %317 = vmatprep.subr.mxu0 0.0
  %318 = vmatpush2.msra.mxu0 0.0
  %319 = vmatprep.subr.mxu0 0.0
  %320 = vmatpush2.msra.mxu0 0.0
  %321 = vmatprep.subr.mxu0 0.0
  %322 = vmatpush2.msra.mxu0 0.0
  %323 = vmatprep.subr.mxu0 0.0
  %324 = vmatpush2.msra.mxu0 0.0
  %325 = vmatprep.mubr.f32.mxu0 0.0
  %326 = vmatmul.mubr.f32.gmra.mxu0 %v259
  %v327 = vpop.f32.mrf.mxu0
  %v328 = vadd.f32 0.0, %v327
  %v329 = vpop.f32.mrf.mxu0
  %v330 = vadd.f32 0.0, %v329
  %331 = vdwg.mxu0
  %332 = vmatprep.subr.mxu0 0.0
  %333 = vmatpush1.msra.mxu0 0.0
  %334 = vmatprep.subr.mxu0 0.0
  %335 = vmatpush1.msra.mxu0 0.0
  %336 = vmatprep.subr.mxu0 0.0
  %337 = vmatpush1.msra.mxu0 0.0
  %338 = vmatprep.subr.mxu0 0.0
  %339 = vmatpush1.msra.mxu0 0.0
  %340 = vmatprep.subr.mxu0 0.0
  %341 = vmatpush1.msra.mxu0 0.0
  %342 = vmatprep.subr.mxu0 0.0
  %343 = vmatpush1.msra.mxu0 0.0
  %344 = vmatprep.subr.mxu0 0.0
  %345 = vmatpush1.msra.mxu0 0.0
  %346 = vmatprep.subr.mxu0 0.0
  %347 = vmatpush1.msra.mxu0 0.0
  %348 = vmatprep.subr.mxu0 0.0
  %349 = vmatpush1.msra.mxu0 0.0
  %350 = vmatprep.subr.mxu0 0.0
  %351 = vmatpush1.msra.mxu0 0.0
  %352 = vmatprep.subr.mxu0 0.0
  %353 = vmatpush1.msra.mxu0 0.0
  %354 = vmatprep.subr.mxu0 0.0
  %355 = vmatpush1.msra.mxu0 0.0
  %356 = vmatprep.subr.mxu0 0.0
  %357 = vmatpush1.msra.mxu0 0.0
  %358 = vmatprep.subr.mxu0 0.0
  %359 = vmatpush1.msra.mxu0 0.0
  %360 = vmatprep.subr.mxu0 0.0
  %361 = vmatpush1.msra.mxu0 0.0
  %362 = vmatprep.subr.mxu0 %v255
  %363 = vmatpush1.msra.mxu0 %v254
  %364 = vmatprep.subr.mxu0 0.0
  %365 = vmatpush2.msra.mxu0 0.0
  %366 = vmatprep.subr.mxu0 0.0
  %367 = vmatpush2.msra.mxu0 0.0
  %368 = vmatprep.subr.mxu0 0.0
  %369 = vmatpush2.msra.mxu0 0.0
  %370 = vmatprep.subr.mxu0 0.0
  %371 = vmatpush2.msra.mxu0 0.0
  %372 = vmatprep.subr.mxu0 0.0
  %373 = vmatpush2.msra.mxu0 0.0
  %374 = vmatprep.subr.mxu0 0.0
  %375 = vmatpush2.msra.mxu0 0.0
  %376 = vmatprep.subr.mxu0 0.0
  %377 = vmatpush2.msra.mxu0 0.0
  %378 = vmatprep.subr.mxu0 0.0
  %379 = vmatpush2.msra.mxu0 0.0
  %380 = vmatprep.subr.mxu0 0.0
  %381 = vmatpush2.msra.mxu0 0.0
  %382 = vmatprep.subr.mxu0 0.0
  %383 = vmatpush2.msra.mxu0 0.0
  %384 = vmatprep.subr.mxu0 0.0
  %385 = vmatpush2.msra.mxu0 0.0
  %386 = vmatprep.subr.mxu0 0.0
  %387 = vmatpush2.msra.mxu0 0.0
  %388 = vmatprep.subr.mxu0 0.0
  %389 = vmatpush2.msra.mxu0 0.0
  %390 = vmatprep.subr.mxu0 0.0
  %391 = vmatpush2.msra.mxu0 0.0
  %392 = vmatprep.subr.mxu0 0.0
  %393 = vmatpush2.msra.mxu0 0.0
  %394 = vmatprep.subr.mxu0 0.0
  %395 = vmatpush2.msra.mxu0 0.0
  %396 = vmatprep.mubr.f32.mxu0 0.0
  %397 = vmatmul.mubr.f32.gmra.mxu0 %v259
  %v398 = vpop.f32.mrf.mxu0
  %v399 = vadd.f32 0.0, %v398
  %v400 = vpop.f32.mrf.mxu0
  %v401 = vadd.f32 0.0, %v400
  %402 = vdwg.mxu0
  %v403 = vld [vmem:[%s5] sm:$0xff]
  %v404 = vld [vmem:[%s6] sm:$0xff]
  %v405 = vadd.f32 %v328, %v330
  %v406 = vadd.f32 %v405, %v399
  %v407 = vadd.f32 %v406, %v401
  %408 = vadd.xlane.f32.xlu0 %v407
  %v409 = vpop.xlane.xlu0 %408
  %v410 = vmul.f32 %v409, 0.001953125
  %v411 = vsub.f32 %v328, %v410
  %v412 = vsub.f32 %v330, %v410
  %v413 = vsub.f32 %v399, %v410
  %v414 = vsub.f32 %v401, %v410
  %v415 = vmul.f32 %v411, %v411
  %v416 = vmul.f32 %v412, %v412
  %v417 = vmul.f32 %v413, %v413
  %v418 = vmul.f32 %v414, %v414
  %v419 = vadd.f32 %v415, %v416
  %v420 = vadd.f32 %v419, %v417
  %v421 = vadd.f32 %v420, %v418
  %422 = vadd.xlane.f32.xlu0 %v421
  %v423 = vpop.xlane.xlu0 %422
  %v424 = vmul.f32 %v423, 0.001953125
  %v425 = vadd.f32 %v424, 1e-05
  %v426 = vrsqrt.pop %v425
  %v427 = vmul.f32 %v403, %v426
  %429 = vset.pattern.permute.xlu0 0
  %430 = vperm.xlu0 %429, %v427
  %v431 = vpop.permute.xlu0 %430
  %v433 = vmul.f32 %v411, %v431
  %v434 = vmul.f32 %v412, %v431
  %v435 = vmul.f32 %v413, %v431
  %v436 = vmul.f32 %v414, %v431
  %438 = vset.pattern.permute.xlu0 0
  %439 = vperm.xlu0 %438, %v404
  %v440 = vpop.permute.xlu0 %439
  %v442 = vadd.f32 %v433, %v440
  %v443 = vadd.f32 %v434, %v440
  %v444 = vadd.f32 %v435, %v440
  %v445 = vadd.f32 %v436, %v440
  %v446 = vadd.f32 %v442, %v42
  %v447 = vadd.f32 %v443, %v43
  %v448 = vadd.f32 %v444, %v44
  %v449 = vadd.f32 %v445, %v45
  %v450 = vmax.f32 %v446, 0.0
  %v451 = vmax.f32 %v447, 0.0
  %v452 = vmax.f32 %v448, 0.0
  %v453 = vmax.f32 %v449, 0.0
  %454 = vst [vmem:[%s7] sm:$0xff] %v450
  %455 = vst [vmem:[%s7 + $0x8] sm:$0xff] %v451
  %456 = vst [vmem:[%s7 + $0x10] sm:$0xff] %v452
  %457 = vst [vmem:[%s7 + $0x18] sm:$0xff] %v453
  // Predicated region
  $region30: #{resnet_block_forward.1} parent=0 // pred_check
    _
  $region31: #{resnet_block_forward.1} parent=0 // pred_check_branch
    %459 = sbr.rel (0) target = $region33
  $region32: #{resnet_block_forward.1} parent=0 // pred_region
    _
  $region33: #{resnet_block_forward.1} parent=0 // pred_fallthru
    _
  // Predicated region
  $region34: #{resnet_block_forward.1} parent=0 // pred_check
    _
  $region35: #{resnet_block_forward.1} parent=0 // pred_check_branch
    %461 = sbr.rel (0) target = $region37
  $region36: #{resnet_block_forward.1} parent=0 // pred_region
    _
  $region37: #{resnet_block_forward.1} parent=0 // pred_fallthru
    _

</llo_original>
